<compile_context>
chip_gen: v7x
topology: tpu7x:2x2x1
jax: 0.10.0
libtpu: 0.0.40
codegen_flags: <defaults>
</compile_context>

<pallas_src>
import jax
import jax.numpy as jnp
from jax.experimental import pallas as pl
from jax.experimental.pallas import tpu as pltpu


def _round_up(x, m):
    return ((x + m - 1) // m) * m


def _pick_flat_tile(m_flat, halo_block, n_batch):
    """Largest lane-dense flat-spatial tile TQ such that
       * TQ covers the tap halo and is a multiple of the halo block HB
         (so the halo BlockSpec lands on a block boundary),
       * the grid has >= 4 total steps (keeps both v7x TensorCores fed with
         >= 2 pipelined steps each; harmless on single-TC v5e/v6e).
    Never falls back to a single full-extent block; the wrapper pads M up to a
    multiple of TQ instead."""
    for t in (2048, 1024, 512, 256, 128):
        if t < halo_block or t % halo_block != 0:
            continue
        if t <= m_flat and pl.cdiv(m_flat, t) * n_batch >= 4:
            return t
    return halo_block


def _make_conv_kernel(k, wp, tq, hb):
    """Kernel: in-VMEM im2col + K*K MXU matmuls accumulated in f32."""

    def kernel(xa_ref, xb_ref, w_ref, o_ref, win_ref, acc_ref):
        # xa_ref: (1, Cin_p, TQ)  main flat tile       (compute dtype)
        # xb_ref: (1, Cin_p, HB)  right halo block     (compute dtype)
        # w_ref : (K*K, Cout_p, Cin_p) resident weights
        # o_ref : (1, Cout_p, TQ) lane-dense output tile
        # win_ref: (Cin_p, TQ+HB) VMEM window scratch
        # acc_ref: (Cout_p, TQ)   f32 accumulator scratch

        # Assemble the flat window [tile_start, tile_start + TQ + HB) in VMEM.
        # Taps read at most (K-1)*Wp + (K-1) <= HB elements past the tile.
        win_ref[:, :tq] = xa_ref[0]
        win_ref[:, tq:] = xb_ref[0]

        # In-VMEM im2col: each (i, j) tap is a static lane-shifted view of the
        # window; accumulate K*K MXU matmuls (f32 accumulation).
        acc_ref[...] = jnp.zeros_like(acc_ref)
        for i in range(k):
            for j in range(k):
                off = i * wp + j
                acc_ref[...] += jnp.dot(
                    w_ref[i * k + j],              # (Cout_p, Cin_p)
                    win_ref[:, off:off + tq],      # (Cin_p, TQ)
                    preferred_element_type=jnp.float32)

        o_ref[0] = acc_ref[...].astype(o_ref.dtype)

    return kernel


def s2train_conv2d(x, weight, padding, *, compute_dtype=jnp.bfloat16):
    """Forward of S2TrainConv2d.

    compute_dtype: dtype of the MXU operands.  bfloat16 (default) is an
    intentional precision trade-off (accumulation is always f32); pass
    jnp.float32 for the original module's full-f32 semantics."""
    n, cin, h, w = x.shape
    cout, cin_w, kh, kw = weight.shape
    assert cin_w == cin and kh == kw, "square kernel, matching channels"
    k = kh
    p = int(padding)
    ho = h + 2 * p - k + 1
    wo = w + 2 * p - k + 1
    hp, wp = h + 2 * p, w + 2 * p
    assert ho >= 1 and wo >= 1

    cdtype = jnp.dtype(compute_dtype)
    out_dtype = x.dtype
    kk = k * k

    # Pad channels to a full sublane group (keeps MXU contraction and output
    # sublanes packed for small channel counts; zero channels contribute 0).
    cin_p = _round_up(cin, 16)
    cout_p = _round_up(cout, 16)

    # ---- glue: cast FIRST (all subsequent HBM traffic is compute-dtype). ----
    x_c = x.astype(cdtype)
    w_c = weight.astype(cdtype)

    m_flat = ho * wp                        # flat output length (junk cols incl.)
    halo = (k - 1) * wp + (k - 1)           # extra flat elements a tile's taps read
    hb = _round_up(max(halo, 1), 128)       # lane-aligned halo block
    tq = _pick_flat_tile(m_flat, hb, n)
    if tq % hb:                             # safety; chooser already guarantees it
        hb = tq
    n_tiles = pl.cdiv(m_flat, tq)
    m_pad = n_tiles * tq
    lflat = m_pad + hb
    step = tq // hb

    # x: pad channels + spatial, flatten spatial (free), pad flat tail.
    x_pad = jnp.pad(x_c, ((0, 0), (0, cin_p - cin), (p, p), (p, p)))
    x_flat = x_pad.reshape(n, cin_p, hp * wp)
    x_flat = jnp.pad(x_flat, ((0, 0), (0, 0), (0, lflat - hp * wp)))

    # weight: (Cout,Cin,K,K) -> (K*K, Cout_p, Cin_p) so w_r[i*K+j] == W[:, :, i, j]
    w_pad = jnp.pad(w_c, ((0, cout_p - cout), (0, cin_p - cin), (0, 0), (0, 0)))
    w_r = w_pad.transpose(2, 3, 0, 1).reshape(kk, cout_p, cin_p)

    # Explicit VMEM budget (review: v5e default scoped is 16 MiB, v7x physical 64 MiB).
    csz = cdtype.itemsize
    osz = jnp.dtype(out_dtype).itemsize
    vmem_need = (2 * cin_p * tq * csz            # main tile (double-buffered)
                 + 2 * cin_p * hb * csz          # halo block (double-buffered)
                 + 2 * kk * cout_p * cin_p * csz  # weights (constant index)
                 + 2 * cout_p * tq * osz         # output tile (double-buffered)
                 + cin_p * (tq + hb) * csz       # window scratch
                 + cout_p * tq * 4)              # f32 accumulator
    vmem_limit = int(max(2 * vmem_need, 32 * 1024 * 1024))

    cost = pl.CostEstimate(
        flops=2 * n * cout * cin * kk * ho * wo,
        transcendentals=0,
        bytes_accessed=(n * cin_p * lflat + kk * cout_p * cin_p) * csz
                       + n * cout_p * m_pad * osz)

    kernel = _make_conv_kernel(k, wp, tq, hb)

    # TODO(synk): for very large Cin*K*K, add a contraction-axis grid dim
    # ("arbitrary") with pl.when init/finalize, and a halo'd manual-DMA row
    # tiling for huge Cin*H*W, to stay inside v7x's 64 MiB VMEM at production
    # sizes; the weight spec could also be single-buffered (pl.Buffered(1)).
    out = pl.pallas_call(
        kernel,
        out_shape=jax.ShapeDtypeStruct((n, cout_p, m_pad), out_dtype),
        grid_spec=pltpu.PrefetchScalarGridSpec(
            num_scalar_prefetch=0,
            grid=(n, n_tiles),
            in_specs=[
                # Main flat tile: walks the flat-spatial axis (pipelined).
                pl.BlockSpec((1, cin_p, tq), lambda nb, t: (nb, 0, t)),
                # Small right-halo block of the SAME array (extra HBM ~HB/TQ).
                pl.BlockSpec((1, cin_p, hb), lambda nb, t: (nb, 0, (t + 1) * step)),
                # Weights: constant index -> DMA'd once, stays resident.
                pl.BlockSpec((kk, cout_p, cin_p), lambda nb, t: (0, 0, 0)),
            ],
            out_specs=pl.BlockSpec((1, cout_p, tq), lambda nb, t: (nb, 0, t)),
            scratch_shapes=[
                pltpu.VMEM((cin_p, tq + hb), cdtype),
                pltpu.VMEM((cout_p, tq), jnp.float32),
            ],
        ),
        compiler_params=pltpu.CompilerParams(
            dimension_semantics=("parallel", "parallel"),
            vmem_limit_bytes=vmem_limit),
        cost_estimate=cost,
    )(x_flat, x_flat, w_r)

    # (N, Cout_p, M_pad): strip channel padding, drop padded flat tail,
    # un-flatten (free), drop the junk columns of the overcompute trick.
    y = out[:, :cout, :m_flat].reshape(n, cout, ho, wp)[:, :, :, :wo]
    return y


if __name__ == "__main__":
    # Small shapes consistent with the module.
    N, Cin, Cout, H, W, K, P = 2, 4, 8, 16, 16, 3, 1

    key = jax.random.PRNGKey(0)
    kx, kw_ = jax.random.split(key)
    x = jax.random.normal(kx, (N, Cin, H, W), dtype=jnp.float32)
    # weight ~ U[0,1) like torch.rand in the module's __init__
    weight = jax.random.uniform(kw_, (Cout, Cin, K, K), dtype=jnp.float32)

    # True f32 reference = the original module's semantics.
    y_ref = jax.lax.conv_general_dilated(
        x, weight, window_strides=(1, 1), padding=((P, P), (P, P)),
        dimension_numbers=("NCHW", "OIHW", "NCHW"),
        precision=jax.lax.Precision.HIGHEST)

    # (1) Default bf16-MXU path, validated tightly against a reference built
    #     from the same bf16-rounded operands (isolates kernel math).
    y_bf16 = jax.block_until_ready(s2train_conv2d(x, weight, P))
    xb = x.astype(jnp.bfloat16).astype(jnp.float32)
    wb = weight.astype(jnp.bfloat16).astype(jnp.float32)
    y_ref_bf16in = jax.lax.conv_general_dilated(
        xb, wb, window_strides=(1, 1), padding=((P, P), (P, P)),
        dimension_numbers=("NCHW", "OIHW", "NCHW"),
        precision=jax.lax.Precision.HIGHEST)
    assert y_bf16.shape == y_ref.shape
    assert jnp.allclose(y_bf16, y_ref_bf16in, atol=1e-3, rtol=1e-3)

    # (2) f32-input path (offered per review): compared to the true f32
    #     reference.  Loose bound only to stay robust if the backend lowers
    #     the f32 MXU dot with reduced-precision passes.
    y_f32 = jax.block_until_ready(
        s2train_conv2d(x, weight, P, compute_dtype=jnp.float32))
    assert y_f32.shape == y_ref.shape
    assert jnp.allclose(y_f32, y_ref, atol=5e-2, rtol=5e-2)

    print("KERNEL_OK")
</pallas_src>

<mosaic_0001>
module attributes {stable_mosaic.version = 11 : i64} {
  func.func @kernel(%arg0: i32, %arg1: i32, %arg2: memref<1x16x256xbf16, #tpu.memory_space<vmem>>, %arg3: memref<1x16x128xbf16, #tpu.memory_space<vmem>>, %arg4: memref<9x16x16xbf16, #tpu.memory_space<vmem>>, %arg5: memref<1x16x256xf32, #tpu.memory_space<vmem>>, %arg6: memref<16x384xbf16, #tpu.memory_space<vmem>>, %arg7: memref<16x256xf32, #tpu.memory_space<vmem>>) attributes {dimension_semantics = [#tpu.dimension_semantics<parallel>, #tpu.dimension_semantics<parallel>], iteration_bounds = array<i64: 2, 2>, scalar_prefetch = 0 : i64, scratch_operands = 2 : i64, tpu.core_type = #tpu.core_type<tc>, window_params = [{transform_indices = @transform_0, window_bounds = array<i64: 1, 16, 256>}, {transform_indices = @transform_1, window_bounds = array<i64: 1, 16, 128>}, {pipeline_mode = #tpu.pipeline_mode<synchronous>, transform_indices = @transform_2, window_bounds = array<i64: 9, 16, 16>}, {transform_indices = @transform_3, window_bounds = array<i64: 1, 16, 256>}]} {
    %c0 = arith.constant 0 : index
    %c0_0 = arith.constant 0 : index
    %c0_1 = arith.constant 0 : index
    %0 = vector.load %arg2[%c0, %c0_0, %c0_1] : memref<1x16x256xbf16, #tpu.memory_space<vmem>>, vector<1x16x256xbf16>
    %1 = vector.shape_cast %0 : vector<1x16x256xbf16> to vector<16x256xbf16>
    %c0_2 = arith.constant 0 : index
    %c0_3 = arith.constant 0 : index
    %2 = vector.load %arg6[%c0_2, %c0_3] : memref<16x384xbf16, #tpu.memory_space<vmem>>, vector<16x256xbf16>
    tpu.vector_store %arg6[%c0_2, %c0_3], %1 {strides = array<i32>} : memref<16x384xbf16, #tpu.memory_space<vmem>>, vector<16x256xbf16>,
    %c0_4 = arith.constant 0 : index
    %c0_5 = arith.constant 0 : index
    %c0_6 = arith.constant 0 : index
    %3 = vector.load %arg3[%c0_4, %c0_5, %c0_6] : memref<1x16x128xbf16, #tpu.memory_space<vmem>>, vector<1x16x128xbf16>
    %4 = vector.shape_cast %3 : vector<1x16x128xbf16> to vector<16x128xbf16>
    %c0_7 = arith.constant 0 : index
    %c256 = arith.constant 256 : index
    %5 = vector.load %arg6[%c0_7, %c256] : memref<16x384xbf16, #tpu.memory_space<vmem>>, vector<16x128xbf16>
    tpu.vector_store %arg6[%c0_7, %c256], %4 {strides = array<i32>} : memref<16x384xbf16, #tpu.memory_space<vmem>>, vector<16x128xbf16>,
    %cst = arith.constant 0.000000e+00 : f32
    %6 = vector.broadcast %cst : f32 to vector<16x256xf32>
    %c0_8 = arith.constant 0 : index
    %c0_9 = arith.constant 0 : index
    %7 = vector.load %arg7[%c0_8, %c0_9] : memref<16x256xf32, #tpu.memory_space<vmem>>, vector<16x256xf32>
    tpu.vector_store %arg7[%c0_8, %c0_9], %6 {strides = array<i32>} : memref<16x256xf32, #tpu.memory_space<vmem>>, vector<16x256xf32>,
    %c0_10 = arith.constant 0 : index
    %c0_11 = arith.constant 0 : index
    %8 = vector.load %arg7[%c0_10, %c0_11] : memref<16x256xf32, #tpu.memory_space<vmem>>, vector<16x256xf32>
    %c0_12 = arith.constant 0 : index
    %c0_13 = arith.constant 0 : index
    %c0_14 = arith.constant 0 : index
    %9 = vector.load %arg4[%c0_12, %c0_13, %c0_14] : memref<9x16x16xbf16, #tpu.memory_space<vmem>>, vector<1x16x16xbf16>
    %10 = vector.shape_cast %9 : vector<1x16x16xbf16> to vector<16x16xbf16>
    %c0_15 = arith.constant 0 : index
    %c0_16 = arith.constant 0 : index
    %11 = vector.load %arg6[%c0_15, %c0_16] : memref<16x384xbf16, #tpu.memory_space<vmem>>, vector<16x256xbf16>
    %cst_17 = arith.constant dense<0.000000e+00> : vector<16x256xf32>
    %12 = tpu.matmul %10, %11, %cst_17 {dimension_numbers = #tpu.dot_dimension_numbers<[1], [0], [0], [1], [0, 0, 1, 1], [], []>} : vector<16x16xbf16>, vector<16x256xbf16>, vector<16x256xf32> -> vector<16x256xf32>
    %13 = arith.addf %8, %12 : vector<16x256xf32>
    %c0_18 = arith.constant 0 : index
    %c0_19 = arith.constant 0 : index
    %14 = vector.load %arg7[%c0_18, %c0_19] : memref<16x256xf32, #tpu.memory_space<vmem>>, vector<16x256xf32>
    tpu.vector_store %arg7[%c0_18, %c0_19], %13 {strides = array<i32>} : memref<16x256xf32, #tpu.memory_space<vmem>>, vector<16x256xf32>,
    %c0_20 = arith.constant 0 : index
    %c0_21 = arith.constant 0 : index
    %15 = vector.load %arg7[%c0_20, %c0_21] : memref<16x256xf32, #tpu.memory_space<vmem>>, vector<16x256xf32>
    %c1 = arith.constant 1 : index
    %c0_22 = arith.constant 0 : index
    %c0_23 = arith.constant 0 : index
    %16 = vector.load %arg4[%c1, %c0_22, %c0_23] : memref<9x16x16xbf16, #tpu.memory_space<vmem>>, vector<1x16x16xbf16>
    %17 = vector.shape_cast %16 : vector<1x16x16xbf16> to vector<16x16xbf16>
    %c0_24 = arith.constant 0 : index
    %c1_25 = arith.constant 1 : index
    %18 = vector.load %arg6[%c0_24, %c1_25] : memref<16x384xbf16, #tpu.memory_space<vmem>>, vector<16x256xbf16>
    %cst_26 = arith.constant dense<0.000000e+00> : vector<16x256xf32>
    %19 = tpu.matmul %17, %18, %cst_26 {dimension_numbers = #tpu.dot_dimension_numbers<[1], [0], [0], [1], [0, 0, 1, 1], [], []>} : vector<16x16xbf16>, vector<16x256xbf16>, vector<16x256xf32> -> vector<16x256xf32>
    %20 = arith.addf %15, %19 : vector<16x256xf32>
    %c0_27 = arith.constant 0 : index
    %c0_28 = arith.constant 0 : index
    %21 = vector.load %arg7[%c0_27, %c0_28] : memref<16x256xf32, #tpu.memory_space<vmem>>, vector<16x256xf32>
    tpu.vector_store %arg7[%c0_27, %c0_28], %20 {strides = array<i32>} : memref<16x256xf32, #tpu.memory_space<vmem>>, vector<16x256xf32>,
    %c0_29 = arith.constant 0 : index
    %c0_30 = arith.constant 0 : index
    %22 = vector.load %arg7[%c0_29, %c0_30] : memref<16x256xf32, #tpu.memory_space<vmem>>, vector<16x256xf32>
    %c2 = arith.constant 2 : index
    %c0_31 = arith.constant 0 : index
    %c0_32 = arith.constant 0 : index
    %23 = vector.load %arg4[%c2, %c0_31, %c0_32] : memref<9x16x16xbf16, #tpu.memory_space<vmem>>, vector<1x16x16xbf16>
    %24 = vector.shape_cast %23 : vector<1x16x16xbf16> to vector<16x16xbf16>
    %c0_33 = arith.constant 0 : index
    %c2_34 = arith.constant 2 : index
    %25 = vector.load %arg6[%c0_33, %c2_34] : memref<16x384xbf16, #tpu.memory_space<vmem>>, vector<16x256xbf16>
    %cst_35 = arith.constant dense<0.000000e+00> : vector<16x256xf32>
    %26 = tpu.matmul %24, %25, %cst_35 {dimension_numbers = #tpu.dot_dimension_numbers<[1], [0], [0], [1], [0, 0, 1, 1], [], []>} : vector<16x16xbf16>, vector<16x256xbf16>, vector<16x256xf32> -> vector<16x256xf32>
    %27 = arith.addf %22, %26 : vector<16x256xf32>
    %c0_36 = arith.constant 0 : index
    %c0_37 = arith.constant 0 : index
    %28 = vector.load %arg7[%c0_36, %c0_37] : memref<16x256xf32, #tpu.memory_space<vmem>>, vector<16x256xf32>
    tpu.vector_store %arg7[%c0_36, %c0_37], %27 {strides = array<i32>} : memref<16x256xf32, #tpu.memory_space<vmem>>, vector<16x256xf32>,
    %c0_38 = arith.constant 0 : index
    %c0_39 = arith.constant 0 : index
    %29 = vector.load %arg7[%c0_38, %c0_39] : memref<16x256xf32, #tpu.memory_space<vmem>>, vector<16x256xf32>
    %c3 = arith.constant 3 : index
    %c0_40 = arith.constant 0 : index
    %c0_41 = arith.constant 0 : index
    %30 = vector.load %arg4[%c3, %c0_40, %c0_41] : memref<9x16x16xbf16, #tpu.memory_space<vmem>>, vector<1x16x16xbf16>
    %31 = vector.shape_cast %30 : vector<1x16x16xbf16> to vector<16x16xbf16>
    %c0_42 = arith.constant 0 : index
    %c18 = arith.constant 18 : index
    %32 = vector.load %arg6[%c0_42, %c18] : memref<16x384xbf16, #tpu.memory_space<vmem>>, vector<16x256xbf16>
    %cst_43 = arith.constant dense<0.000000e+00> : vector<16x256xf32>
    %33 = tpu.matmul %31, %32, %cst_43 {dimension_numbers = #tpu.dot_dimension_numbers<[1], [0], [0], [1], [0, 0, 1, 1], [], []>} : vector<16x16xbf16>, vector<16x256xbf16>, vector<16x256xf32> -> vector<16x256xf32>
    %34 = arith.addf %29, %33 : vector<16x256xf32>
    %c0_44 = arith.constant 0 : index
    %c0_45 = arith.constant 0 : index
    %35 = vector.load %arg7[%c0_44, %c0_45] : memref<16x256xf32, #tpu.memory_space<vmem>>, vector<16x256xf32>
    tpu.vector_store %arg7[%c0_44, %c0_45], %34 {strides = array<i32>} : memref<16x256xf32, #tpu.memory_space<vmem>>, vector<16x256xf32>,
    %c0_46 = arith.constant 0 : index
    %c0_47 = arith.constant 0 : index
    %36 = vector.load %arg7[%c0_46, %c0_47] : memref<16x256xf32, #tpu.memory_space<vmem>>, vector<16x256xf32>
    %c4 = arith.constant 4 : index
    %c0_48 = arith.constant 0 : index
    %c0_49 = arith.constant 0 : index
    %37 = vector.load %arg4[%c4, %c0_48, %c0_49] : memref<9x16x16xbf16, #tpu.memory_space<vmem>>, vector<1x16x16xbf16>
    %38 = vector.shape_cast %37 : vector<1x16x16xbf16> to vector<16x16xbf16>
    %c0_50 = arith.constant 0 : index
    %c19 = arith.constant 19 : index
    %39 = vector.load %arg6[%c0_50, %c19] : memref<16x384xbf16, #tpu.memory_space<vmem>>, vector<16x256xbf16>
    %cst_51 = arith.constant dense<0.000000e+00> : vector<16x256xf32>
    %40 = tpu.matmul %38, %39, %cst_51 {dimension_numbers = #tpu.dot_dimension_numbers<[1], [0], [0], [1], [0, 0, 1, 1], [], []>} : vector<16x16xbf16>, vector<16x256xbf16>, vector<16x256xf32> -> vector<16x256xf32>
    %41 = arith.addf %36, %40 : vector<16x256xf32>
    %c0_52 = arith.constant 0 : index
    %c0_53 = arith.constant 0 : index
    %42 = vector.load %arg7[%c0_52, %c0_53] : memref<16x256xf32, #tpu.memory_space<vmem>>, vector<16x256xf32>
    tpu.vector_store %arg7[%c0_52, %c0_53], %41 {strides = array<i32>} : memref<16x256xf32, #tpu.memory_space<vmem>>, vector<16x256xf32>,
    %c0_54 = arith.constant 0 : index
    %c0_55 = arith.constant 0 : index
    %43 = vector.load %arg7[%c0_54, %c0_55] : memref<16x256xf32, #tpu.memory_space<vmem>>, vector<16x256xf32>
    %c5 = arith.constant 5 : index
    %c0_56 = arith.constant 0 : index
    %c0_57 = arith.constant 0 : index
    %44 = vector.load %arg4[%c5, %c0_56, %c0_57] : memref<9x16x16xbf16, #tpu.memory_space<vmem>>, vector<1x16x16xbf16>
    %45 = vector.shape_cast %44 : vector<1x16x16xbf16> to vector<16x16xbf16>
    %c0_58 = arith.constant 0 : index
    %c20 = arith.constant 20 : index
    %46 = vector.load %arg6[%c0_58, %c20] : memref<16x384xbf16, #tpu.memory_space<vmem>>, vector<16x256xbf16>
    %cst_59 = arith.constant dense<0.000000e+00> : vector<16x256xf32>
    %47 = tpu.matmul %45, %46, %cst_59 {dimension_numbers = #tpu.dot_dimension_numbers<[1], [0], [0], [1], [0, 0, 1, 1], [], []>} : vector<16x16xbf16>, vector<16x256xbf16>, vector<16x256xf32> -> vector<16x256xf32>
    %48 = arith.addf %43, %47 : vector<16x256xf32>
    %c0_60 = arith.constant 0 : index
    %c0_61 = arith.constant 0 : index
    %49 = vector.load %arg7[%c0_60, %c0_61] : memref<16x256xf32, #tpu.memory_space<vmem>>, vector<16x256xf32>
    tpu.vector_store %arg7[%c0_60, %c0_61], %48 {strides = array<i32>} : memref<16x256xf32, #tpu.memory_space<vmem>>, vector<16x256xf32>,
    %c0_62 = arith.constant 0 : index
    %c0_63 = arith.constant 0 : index
    %50 = vector.load %arg7[%c0_62, %c0_63] : memref<16x256xf32, #tpu.memory_space<vmem>>, vector<16x256xf32>
    %c6 = arith.constant 6 : index
    %c0_64 = arith.constant 0 : index
    %c0_65 = arith.constant 0 : index
    %51 = vector.load %arg4[%c6, %c0_64, %c0_65] : memref<9x16x16xbf16, #tpu.memory_space<vmem>>, vector<1x16x16xbf16>
    %52 = vector.shape_cast %51 : vector<1x16x16xbf16> to vector<16x16xbf16>
    %c0_66 = arith.constant 0 : index
    %c36 = arith.constant 36 : index
    %53 = vector.load %arg6[%c0_66, %c36] : memref<16x384xbf16, #tpu.memory_space<vmem>>, vector<16x256xbf16>
    %cst_67 = arith.constant dense<0.000000e+00> : vector<16x256xf32>
    %54 = tpu.matmul %52, %53, %cst_67 {dimension_numbers = #tpu.dot_dimension_numbers<[1], [0], [0], [1], [0, 0, 1, 1], [], []>} : vector<16x16xbf16>, vector<16x256xbf16>, vector<16x256xf32> -> vector<16x256xf32>
    %55 = arith.addf %50, %54 : vector<16x256xf32>
    %c0_68 = arith.constant 0 : index
    %c0_69 = arith.constant 0 : index
    %56 = vector.load %arg7[%c0_68, %c0_69] : memref<16x256xf32, #tpu.memory_space<vmem>>, vector<16x256xf32>
    tpu.vector_store %arg7[%c0_68, %c0_69], %55 {strides = array<i32>} : memref<16x256xf32, #tpu.memory_space<vmem>>, vector<16x256xf32>,
    %c0_70 = arith.constant 0 : index
    %c0_71 = arith.constant 0 : index
    %57 = vector.load %arg7[%c0_70, %c0_71] : memref<16x256xf32, #tpu.memory_space<vmem>>, vector<16x256xf32>
    %c7 = arith.constant 7 : index
    %c0_72 = arith.constant 0 : index
    %c0_73 = arith.constant 0 : index
    %58 = vector.load %arg4[%c7, %c0_72, %c0_73] : memref<9x16x16xbf16, #tpu.memory_space<vmem>>, vector<1x16x16xbf16>
    %59 = vector.shape_cast %58 : vector<1x16x16xbf16> to vector<16x16xbf16>
    %c0_74 = arith.constant 0 : index
    %c37 = arith.constant 37 : index
    %60 = vector.load %arg6[%c0_74, %c37] : memref<16x384xbf16, #tpu.memory_space<vmem>>, vector<16x256xbf16>
    %cst_75 = arith.constant dense<0.000000e+00> : vector<16x256xf32>
    %61 = tpu.matmul %59, %60, %cst_75 {dimension_numbers = #tpu.dot_dimension_numbers<[1], [0], [0], [1], [0, 0, 1, 1], [], []>} : vector<16x16xbf16>, vector<16x256xbf16>, vector<16x256xf32> -> vector<16x256xf32>
    %62 = arith.addf %57, %61 : vector<16x256xf32>
    %c0_76 = arith.constant 0 : index
    %c0_77 = arith.constant 0 : index
    %63 = vector.load %arg7[%c0_76, %c0_77] : memref<16x256xf32, #tpu.memory_space<vmem>>, vector<16x256xf32>
    tpu.vector_store %arg7[%c0_76, %c0_77], %62 {strides = array<i32>} : memref<16x256xf32, #tpu.memory_space<vmem>>, vector<16x256xf32>,
    %c0_78 = arith.constant 0 : index
    %c0_79 = arith.constant 0 : index
    %64 = vector.load %arg7[%c0_78, %c0_79] : memref<16x256xf32, #tpu.memory_space<vmem>>, vector<16x256xf32>
    %c8 = arith.constant 8 : index
    %c0_80 = arith.constant 0 : index
    %c0_81 = arith.constant 0 : index
    %65 = vector.load %arg4[%c8, %c0_80, %c0_81] : memref<9x16x16xbf16, #tpu.memory_space<vmem>>, vector<1x16x16xbf16>
    %66 = vector.shape_cast %65 : vector<1x16x16xbf16> to vector<16x16xbf16>
    %c0_82 = arith.constant 0 : index
    %c38 = arith.constant 38 : index
    %67 = vector.load %arg6[%c0_82, %c38] : memref<16x384xbf16, #tpu.memory_space<vmem>>, vector<16x256xbf16>
    %cst_83 = arith.constant dense<0.000000e+00> : vector<16x256xf32>
    %68 = tpu.matmul %66, %67, %cst_83 {dimension_numbers = #tpu.dot_dimension_numbers<[1], [0], [0], [1], [0, 0, 1, 1], [], []>} : vector<16x16xbf16>, vector<16x256xbf16>, vector<16x256xf32> -> vector<16x256xf32>
    %69 = arith.addf %64, %68 : vector<16x256xf32>
    %c0_84 = arith.constant 0 : index
    %c0_85 = arith.constant 0 : index
    %70 = vector.load %arg7[%c0_84, %c0_85] : memref<16x256xf32, #tpu.memory_space<vmem>>, vector<16x256xf32>
    tpu.vector_store %arg7[%c0_84, %c0_85], %69 {strides = array<i32>} : memref<16x256xf32, #tpu.memory_space<vmem>>, vector<16x256xf32>,
    %c0_86 = arith.constant 0 : index
    %c0_87 = arith.constant 0 : index
    %71 = vector.load %arg7[%c0_86, %c0_87] : memref<16x256xf32, #tpu.memory_space<vmem>>, vector<16x256xf32>
    %c0_88 = arith.constant 0 : index
    %c0_89 = arith.constant 0 : index
    %c0_90 = arith.constant 0 : index
    %72 = vector.load %arg5[%c0_88, %c0_89, %c0_90] : memref<1x16x256xf32, #tpu.memory_space<vmem>>, vector<1x16x256xf32>
    %73 = vector.shape_cast %72 : vector<1x16x256xf32> to vector<16x256xf32>
    %74 = vector.shape_cast %71 : vector<16x256xf32> to vector<1x16x256xf32>
    tpu.vector_store %arg5[%c0_88, %c0_89, %c0_90], %74 {strides = array<i32>} : memref<1x16x256xf32, #tpu.memory_space<vmem>>, vector<1x16x256xf32>,
    return
  }
  func.func @transform_0(%arg0: i32, %arg1: i32) -> (i32, i32, i32) {
    %c0_i32 = arith.constant 0 : i32
    %c0_i32_0 = arith.constant 0 : i32
    return %arg0, %c0_i32, %arg1 : i32, i32, i32
  }
  func.func @transform_1(%arg0: i32, %arg1: i32) -> (i32, i32, i32) {
    %c1_i32 = arith.constant 1 : i32
    %0 = arith.addi %arg1, %c1_i32 : i32
    %c2_i32 = arith.constant 2 : i32
    %1 = arith.muli %0, %c2_i32 : i32
    %c0_i32 = arith.constant 0 : i32
    %c0_i32_0 = arith.constant 0 : i32
    return %arg0, %c0_i32, %1 : i32, i32, i32
  }
  func.func @transform_2(%arg0: i32, %arg1: i32) -> (i32, i32, i32) {
    %c0_i32 = arith.constant 0 : i32
    %c0_i32_0 = arith.constant 0 : i32
    %c0_i32_1 = arith.constant 0 : i32
    %c0_i32_2 = arith.constant 0 : i32
    return %c0_i32, %c0_i32_0, %c0_i32_1 : i32, i32, i32
  }
  func.func @transform_3(%arg0: i32, %arg1: i32) -> (i32, i32, i32) {
    %c0_i32 = arith.constant 0 : i32
    %c0_i32_0 = arith.constant 0 : i32
    return %arg0, %c0_i32, %arg1 : i32, i32, i32
  }
}

</mosaic_0001>

<llo_original>
// kernel: tpu_custom_call.1
$region0: #{tpu_custom_call.1}
  #allocation0 [shape = 'u32[]', space=smem, size = 0x4, offset = 0x4, fixed_abs, tag = 'smem constant byte address 0x4 - core index']
  #allocation1 [shape = 'u32[144,128]{1,0:T(1,128)}', space=vmem, size = 0x12000, scoped, tag = 'internal scratch']
  #allocation2 [shape = 'bf16[16,384]{1,0:T(16,128)(2,1)}', space=vmem, size = 0x3000, scoped, tag = 'scratch operand']
  #allocation3 [shape = 'f32[16,256]{1,0:T(8,128)}', space=vmem, size = 0x4000, scoped, tag = 'scratch operand']
  %s0 = inlined_call_operand.hbm [shape: bf16[2,16,640], index: 0, kind: input, shape index: {}]
  %s1 = inlined_call_operand.hbm [shape: bf16[2,16,640], index: 1, kind: input, shape index: {}]
  %s2 = inlined_call_operand.hbm [shape: bf16[9,16,16], index: 2, kind: input, shape index: {}]
  %s3 = inlined_call_operand.hbm [shape: f32[2,16,512], index: 3, kind: output, shape index: {}]
  %s4 = sld [smem:[#allocation0]]
  $region57: #{tpu_custom_call.1} parent=0
    _
  %s6 = ssub.s32 1, %s4
  %s7 = scalar_select 0, %s6, %s4
  $region1: #{tpu_custom_call.1} parent=0
    #allocation4 [shape = 'u8[16384]{0}', space=vmem, size = 0x4000, scoped, tag = 'input window, operand 0']
    #allocation5 [shape = 's32[2]{0}', space=sflag, size = 0x8, scoped, tag = 'scoped memory for tpu_custom_call.1']
    #allocation6 [shape = 's32[2]{0}', space=sflag, size = 0x8, scoped, tag = 'scoped memory for tpu_custom_call.1']
    #allocation7 [shape = 'u8[8192]{0}', space=vmem, size = 0x2000, scoped, tag = 'input window, operand 1']
    #allocation8 [shape = 's32[2]{0}', space=sflag, size = 0x8, scoped, tag = 'scoped memory for tpu_custom_call.1']
    #allocation9 [shape = 'u8[36864]{0}', space=vmem, size = 0x9000, scoped, tag = 'input window, operand 2, single buffered']
    #allocation10 [shape = 'u8[32768]{0}', space=vmem, size = 0x8000, scoped, tag = 'output window, operand 0']
    %8 = vsyncpa [#allocation5], 0
    %s9 = scalar_lea.sflag [#allocation5], 1
    %10 = vsyncpa %s9, 0
    %11 = vsyncpa [#allocation8], 0
    %s12 = scalar_lea.sflag [#allocation8], 1
    %13 = vsyncpa %s12, 0
    %14 = vsyncpa [#allocation6], 0
    %s15 = scalar_lea.sflag [#allocation6], 1
    %16 = vsyncpa %s15, 0
    loop: start=0, step=1, limit=6
    $region2: #{tpu_custom_call.1} parent=1 // loop_pre_header
      _
    $region3: #{tpu_custom_call.1} parent=1 // loop_header
      %s18 = sphi 0, %s22
      %p19 = scmp.ge.s32.totalorder %s18, 6
      %s25 = sphi 0, %s37
      %s26 = sphi 0, %s33
      %s27 = sphi 0, %s25
      %s28 = sphi 0, %s26
      %s29 = sphi 0, %s27
      %s30 = sphi 0, %s28
      %s42 = sphi 0, %s44
      %s45 = sphi 0, %s42
      %s46 = sphi 0, %s45
      %s62 = sphi 0, %s46
      %s74 = sphi 0, %s76
      %s77 = sphi 0, %s74
      %s78 = sphi 0, %s77
      %s94 = sphi 0, %s78
      %s98 = sphi 0, %s98
      %s100 = sphi 0, %s98
      %s101 = sphi 0, %s100
      %s115 = sphi 0, %s101
      %s123 = sphi 0, %s125
      %s126 = sphi 0, %s123
      %s127 = sphi 0, %s126
      %s143 = sphi 0, %s127
    $region4: #{tpu_custom_call.1} parent=1 // loop_header_branch
      %21 = sbr.rel (%p19) target = $region8
    $region5: #{tpu_custom_call.1} parent=1 // loop_body
      %s23 = ssub.s32 %s18, 1
      %s24 = ssub.s32 %s18, 2
      %s31 = sadd.s32 1, %s26
      %p32 = scmp.ge.s32.totalorder %s31, 2
      %s33 = scalar_select %p32, 0, %s31
      %s34 = sadd.s32 1, %s25
      %s35 = scalar_select %p32, %s34, %s25
      %p36 = scmp.ge.s32.totalorder %s35, 2
      %s37 = scalar_select %p36, 0, %s35
      %s38 = ssub.s32 %s25, %s37
      %s39 = ssub.s32 %s26, %s33
      %s40 = sor.u32 %s38, %s39
      %p41 = scmp.eq.s32.totalorder %s40, 0
      %s43 = sadd.s32 %s42, 1
      %s44 = scalar_select %p41, %s42, %s43
      %p47 = pneg %p41
      %p48 = scmp.eq.s32.totalorder %s18, 3
      %p49 = por %p47, %p48
      %p50 = scmp.ne.s32.totalorder %s42, %s45
      %p51 = scmp.eq.s32.totalorder %s18, 0
      %p52 = por %p50, %p51
      %p53 = scmp.ne.s32.totalorder %s42, %s45
      %p54 = scmp.eq.s32.totalorder %s23, 3
      %p55 = por %p53, %p54
      %p56 = scmp.ne.s32.totalorder %s45, %s46
      %p57 = scmp.eq.s32.totalorder %s23, 0
      %p58 = por %p56, %p57
      %p59 = scmp.ne.s32.totalorder %s45, %s46
      %p60 = scmp.eq.s32.totalorder %s24, 3
      %p61 = por %p59, %p60
      %p63 = scmp.ne.s32.totalorder %s46, %s62
      %p64 = scmp.eq.s32.totalorder %s24, 0
      %p65 = por %p63, %p64
      %s66 = sadd.s32 %s26, 1
      %s67 = smul.u32 %s66, 2
      %s68 = sadd.s32 %s33, 1
      %s69 = smul.u32 %s68, 2
      %s70 = ssub.s32 %s25, %s37
      %s71 = ssub.s32 %s67, %s69
      %s72 = sor.u32 %s70, %s71
      %p73 = scmp.eq.s32.totalorder %s72, 0
      %s75 = sadd.s32 %s74, 1
      %s76 = scalar_select %p73, %s74, %s75
      %p79 = pneg %p73
      %p80 = scmp.eq.s32.totalorder %s18, 3
      %p81 = por %p79, %p80
      %p82 = scmp.ne.s32.totalorder %s74, %s77
      %p83 = scmp.eq.s32.totalorder %s18, 0
      %p84 = por %p82, %p83
      %p85 = scmp.ne.s32.totalorder %s74, %s77
      %p86 = scmp.eq.s32.totalorder %s23, 3
      %p87 = por %p85, %p86
      %p88 = scmp.ne.s32.totalorder %s77, %s78
      %p89 = scmp.eq.s32.totalorder %s23, 0
      %p90 = por %p88, %p89
      %p91 = scmp.ne.s32.totalorder %s77, %s78
      %p92 = scmp.eq.s32.totalorder %s24, 3
      %p93 = por %p91, %p92
      %p95 = scmp.ne.s32.totalorder %s78, %s94
      %p96 = scmp.eq.s32.totalorder %s24, 0
      %p97 = por %p95, %p96
      %s99 = sadd.s32 %s98, 1
      %p102 = scmp.eq.s32.totalorder %s18, 3
      %p103 = scmp.ne.s32.totalorder %s98, %s100
      %p104 = scmp.eq.s32.totalorder %s18, 0
      %p105 = por %p103, %p104
      %p106 = scmp.ne.s32.totalorder %s98, %s100
      %p107 = scmp.eq.s32.totalorder %s23, 3
      %p108 = por %p106, %p107
      %p109 = scmp.ne.s32.totalorder %s100, %s101
      %p110 = scmp.eq.s32.totalorder %s23, 0
      %p111 = por %p109, %p110
      %p112 = scmp.ne.s32.totalorder %s100, %s101
      %p113 = scmp.eq.s32.totalorder %s24, 3
      %p114 = por %p112, %p113
      %p116 = scmp.ne.s32.totalorder %s101, %s115
      %p117 = scmp.eq.s32.totalorder %s24, 0
      %p118 = por %p116, %p117
      %s119 = ssub.s32 %s25, %s37
      %s120 = ssub.s32 %s26, %s33
      %s121 = sor.u32 %s119, %s120
      %p122 = scmp.eq.s32.totalorder %s121, 0
      %s124 = sadd.s32 %s123, 1
      %s125 = scalar_select %p122, %s123, %s124
      %p128 = pneg %p122
      %p129 = scmp.eq.s32.totalorder %s18, 3
      %p130 = por %p128, %p129
      %p131 = scmp.ne.s32.totalorder %s123, %s126
      %p132 = scmp.eq.s32.totalorder %s18, 0
      %p133 = por %p131, %p132
      %p134 = scmp.ne.s32.totalorder %s123, %s126
      %p135 = scmp.eq.s32.totalorder %s23, 3
      %p136 = por %p134, %p135
      %p137 = scmp.ne.s32.totalorder %s126, %s127
      %p138 = scmp.eq.s32.totalorder %s23, 0
      %p139 = por %p137, %p138
      %p140 = scmp.ne.s32.totalorder %s126, %s127
      %p141 = scmp.eq.s32.totalorder %s24, 3
      %p142 = por %p140, %p141
      %p144 = scmp.ne.s32.totalorder %s127, %s143
      %p145 = scmp.eq.s32.totalorder %s24, 0
      %p146 = por %p144, %p145
      %p147 = scmp.le.s32.totalorder 1, %s18
      %p148 = scmp.lt.s32.totalorder %s18, 5
      %p149 = pnand %p147, %p148
      %p150 = pneg %p149
      // Predicated region
      $region9: #{tpu_custom_call.1} parent=5 // pred_check
        _
      $region10: #{tpu_custom_call.1} parent=5 // pred_check_branch
        %152 = sbr.rel (%p149) target = $region12
      $region11: #{tpu_custom_call.1} parent=5 // pred_region
        %s153 = ssub.s32 %s18, 1
        // Predicated region
        $region13: #{tpu_custom_call.1} parent=11 // pred_check
          %p154 = pneg %p111
        $region14: #{tpu_custom_call.1} parent=11 // pred_check_branch
          %156 = sbr.rel (%p154) target = $region16
        $region15: #{tpu_custom_call.1} parent=11 // pred_region
          %s158 = ssub.s32 1152, 1152
          %159 = vsyncadd [#allocation8], %s158
          %s160 = sshll.u32 [#allocation9], 4
          %s161 = int_to_ptr.vmem [resolvable:$true] %s160
          %166 = dma.hbm_to_vmem [thread:$0]  %s2, 1152, %s161, [#allocation8], 64, 64, 4
        $region16: #{tpu_custom_call.1} parent=11 // pred_fallthru
          _
      $region12: #{tpu_custom_call.1} parent=5 // pred_fallthru
        _
      %p167 = scmp.lt.s32.totalorder %s18, 4
      // Predicated region
      $region17: #{tpu_custom_call.1} parent=5 // pred_check
        %p168 = pneg %p167
      $region18: #{tpu_custom_call.1} parent=5 // pred_check_branch
        %170 = sbr.rel (%p168) target = $region20
      $region19: #{tpu_custom_call.1} parent=5 // pred_region
        // Predicated region
        $region21: #{tpu_custom_call.1} parent=19 // pred_check
          %p171 = pneg %p52
        $region22: #{tpu_custom_call.1} parent=19 // pred_check_branch
          %173 = sbr.rel (%p171) target = $region24
        $region23: #{tpu_custom_call.1} parent=19 // pred_region
          %s174 = sand.u32 %s42, 1
          %s175 = scalar_lea.sflag [#allocation5], %s174
          %s176 = sand.u32 %s42, 1
          %s177 = smul.addr %s176, 16
          %s178 = scalar_lea.vmem [#allocation4], %s177
          %s179 = smul.u32 2, %s26
          %s180 = ssub.s32 5, %s179
          %p181 = scmp.lt.s32.totalorder %s180, 2
          %s182 = scalar_select %p181, %s180, 2
          %s183 = smul.u32 128, %s182
          %s185 = ssub.s32 256, %s183
          %186 = vsyncadd %s175, %s185
          %p187 = scmp.ne.s32.totalorder 0, %s183
          %s188 = smul.addr %s25, 10
          %s189 = sadd.s32 %s179, %s188
          %s190 = smul.addr %s189, 64
          %s191 = scalar_lea.hbm %s0, %s190
          %s192 = smul.u32 %s182, 4
          %s193 = smul.u32 %s192, 2
          %s194 = sshll.u32 %s178, 4
          %s195 = int_to_ptr.vmem [resolvable:$true] %s194
          %s196 = sshll.u32 %s193, 4
          %200 = dma.hbm_to_vmem [thread:$0]  (%p187), %s191, %s196, %s195, %s175, 320, 128, %s192
        $region24: #{tpu_custom_call.1} parent=19 // pred_fallthru
          _
        // Predicated region
        $region25: #{tpu_custom_call.1} parent=19 // pred_check
          %p201 = pneg %p84
        $region26: #{tpu_custom_call.1} parent=19 // pred_check_branch
          %203 = sbr.rel (%p201) target = $region28
        $region27: #{tpu_custom_call.1} parent=19 // pred_region
          %s204 = sand.u32 %s18, 1
          %s205 = scalar_lea.sflag [#allocation8], %s204
          %s206 = sand.u32 %s74, 1
          %s207 = smul.addr %s206, 8
          %s208 = scalar_lea.vmem [#allocation7], %s207
          %s209 = sadd.s32 %s26, 1
          %s210 = smul.u32 %s209, 2
          %s212 = ssub.s32 128, 128
          %213 = vsyncadd %s205, %s212
          %s214 = smul.addr %s25, 10
          %s215 = sadd.s32 %s210, %s214
          %s216 = smul.addr %s215, 64
          %s217 = scalar_lea.hbm %s1, %s216
          %s218 = sshll.u32 %s208, 4
          %s219 = int_to_ptr.vmem [resolvable:$true] %s218
          %224 = dma.hbm_to_vmem [thread:$0]  %s217, 128, %s219, %s205, 320, 64, 4
        $region28: #{tpu_custom_call.1} parent=19 // pred_fallthru
          _
      $region20: #{tpu_custom_call.1} parent=5 // pred_fallthru
        _
      %p225 = scmp.le.s32.totalorder 1, %s18
      %p226 = scmp.lt.s32.totalorder %s18, 5
      %p227 = pnand %p225, %p226
      %p228 = pneg %p227
      // Predicated region
      $region29: #{tpu_custom_call.1} parent=5 // pred_check
        _
      $region30: #{tpu_custom_call.1} parent=5 // pred_check_branch
        %230 = sbr.rel (%p227) target = $region32
      $region31: #{tpu_custom_call.1} parent=5 // pred_region
        %s231 = ssub.s32 %s18, 1
        %s232 = sand.u32 %s45, 1
        %s233 = scalar_lea.sflag [#allocation5], %s232
        %s234 = sand.u32 %s45, 1
        %s235 = smul.addr %s234, 16
        %s236 = scalar_lea.vmem [#allocation4], %s235
        // Predicated region
        $region33: #{tpu_custom_call.1} parent=31 // pred_check
          %p237 = pneg %p58
        $region34: #{tpu_custom_call.1} parent=31 // pred_check_branch
          %239 = sbr.rel (%p237) target = $region36
        $region35: #{tpu_custom_call.1} parent=31 // pred_region
          %240 = dma.done %s233, 256
        $region36: #{tpu_custom_call.1} parent=31 // pred_fallthru
          _
        %s241 = sand.u32 %s23, 1
        %s242 = scalar_lea.sflag [#allocation8], %s241
        %s243 = sand.u32 %s77, 1
        %s244 = smul.addr %s243, 8
        %s245 = scalar_lea.vmem [#allocation7], %s244
        // Predicated region
        $region37: #{tpu_custom_call.1} parent=31 // pred_check
          %p246 = pneg %p90
        $region38: #{tpu_custom_call.1} parent=31 // pred_check_branch
          %248 = sbr.rel (%p246) target = $region40
        $region39: #{tpu_custom_call.1} parent=31 // pred_region
          %249 = dma.done %s242, 128
        $region40: #{tpu_custom_call.1} parent=31 // pred_fallthru
          _
        // Predicated region
        $region41: #{tpu_custom_call.1} parent=31 // pred_check
          %p250 = pneg %p111
        $region42: #{tpu_custom_call.1} parent=31 // pred_check_branch
          %252 = sbr.rel (%p250) target = $region44
        $region43: #{tpu_custom_call.1} parent=31 // pred_region
          %253 = dma.done [#allocation8], 1152
        $region44: #{tpu_custom_call.1} parent=31 // pred_fallthru
          _
        %s254 = sand.u32 %s45, 1
        %s255 = scalar_lea.sflag [#allocation5], %s254
        %s256 = sand.u32 %s45, 1
        %s257 = smul.addr %s256, 16
        %s258 = scalar_lea.vmem [#allocation4], %s257
        %p259 = pneg %p58
        %p260 = pneg %p55
        %s261 = sand.u32 %s23, 1
        %s262 = scalar_lea.sflag [#allocation8], %s261
        %s263 = sand.u32 %s77, 1
        %s264 = smul.addr %s263, 8
        %s265 = scalar_lea.vmem [#allocation7], %s264
        %p266 = pneg %p90
        %p267 = pneg %p87
        %p268 = pneg %p111
        %p269 = pneg %p108
        %p270 = pneg %p139
        %p271 = pneg %p136
        %s272 = sand.u32 %s126, 1
        %s273 = scalar_lea.sflag [#allocation6], %s272
        %s274 = sand.u32 %s126, 1
        %s275 = smul.addr %s274, 32
        %s276 = scalar_lea.vmem [#allocation10], %s275
        %s277 = smul.u32 2, %s28
        %s278 = ssub.s32 5, %s277
        %p279 = scmp.lt.s32.totalorder %s278, 2
        %s280 = scalar_select %p279, %s278, 2
        %s281 = smul.u32 128, %s280
        %s282 = sadd.s32 %s28, 1
        %s283 = smul.u32 %s282, 2
        %s284 = smul.u32 2, %s28
        %v286 = vld [vmem:[%s236] sm:$0xff]
        %v287 = vld [vmem:[%s236 + $0x8] sm:$0xff]
        %v290 = vunpack.c.l.b16 %v286
        %v291 = vunpack.c.h.b16 %v286
        %v292 = vunpack.c.l.b16 %v287
        %v293 = vunpack.c.h.b16 %v287
        %v294 = vpack.c.b16 %v292, %v290
        %v295 = vpack.c.b16 %v293, %v291
        %298 = vst [vmem:[#allocation2] sm:$0xff] %v294
        %299 = vst [vmem:[#allocation2 + $0x8] sm:$0xff] %v295
        %v300 = vld [vmem:[%s245] sm:$0xf]
        %v301 = vld [vmem:[%s245 + $0x4] sm:$0xf]
        %v304 = vunpack.c.l.b16 %v300
        %v305 = vunpack.c.l.b16 %v301
        %v306 = vpack.c.b16 %v305, %v304
        %308 = vst [vmem:[#allocation2 + $0x10] sm:$0xff] %v306
        %309 = vst [vmem:[#allocation3] sm:$0xff] 0.0
        %310 = vst [vmem:[#allocation3 + $0x8] sm:$0xff] 0.0
        %311 = vst [vmem:[#allocation3 + $0x10] sm:$0xff] 0.0
        %312 = vst [vmem:[#allocation3 + $0x18] sm:$0xff] 0.0
        %v313 = vld [vmem:[#allocation3] sm:$0xff]
        %v314 = vld [vmem:[#allocation3 + $0x8] sm:$0xff]
        %v315 = vld [vmem:[#allocation3 + $0x10] sm:$0xff]
        %v316 = vld [vmem:[#allocation3 + $0x18] sm:$0xff]
        %v317 = vld [vmem:[#allocation9] sm:$0xf]
        %v318 = vld [vmem:[#allocation9 + $0x4] sm:$0xf]
        %v319 = vld [vmem:[#allocation2] sm:$0xff]
        %v320 = vld [vmem:[#allocation2 + $0x8] sm:$0xff]
        %v323 = vunpack.c.l.b16 %v317
        %v324 = vunpack.c.l.b16 %v318
        %v325 = vpack.c.b16 %v324, %v323
        %vm326 = vcmask 130048
        %v328 = vsel %vm326, %v325, 0
        %330 = vmatprep.subr.bf16.mxu0 %v320
        %331 = vmatpush1.bf16.msra.mxu0 %v319
        %332 = vmatprep.subr.bf16.mxu0 0
        %333 = vmatpush1.bf16.msra.mxu0 0
        %334 = vmatprep.subr.bf16.mxu0 0
        %335 = vmatpush1.bf16.msra.mxu0 0
        %336 = vmatprep.subr.bf16.mxu0 0
        %337 = vmatpush1.bf16.msra.mxu0 0
        %338 = vmatprep.subr.bf16.mxu0 0
        %339 = vmatpush1.bf16.msra.mxu0 0
        %340 = vmatprep.subr.bf16.mxu0 0
        %341 = vmatpush1.bf16.msra.mxu0 0
        %342 = vmatprep.subr.bf16.mxu0 0
        %343 = vmatpush1.bf16.msra.mxu0 0
        %344 = vmatprep.subr.bf16.mxu0 0
        %345 = vmatpush1.bf16.msra.mxu0 0
        %346 = vmatprep.subr.bf16.mxu0 0
        %347 = vmatpush1.bf16.msra.mxu0 0
        %348 = vmatprep.subr.bf16.mxu0 0
        %349 = vmatpush1.bf16.msra.mxu0 0
        %350 = vmatprep.subr.bf16.mxu0 0
        %351 = vmatpush1.bf16.msra.mxu0 0
        %352 = vmatprep.subr.bf16.mxu0 0
        %353 = vmatpush1.bf16.msra.mxu0 0
        %354 = vmatprep.subr.bf16.mxu0 0
        %355 = vmatpush1.bf16.msra.mxu0 0
        %356 = vmatprep.subr.bf16.mxu0 0
        %357 = vmatpush1.bf16.msra.mxu0 0
        %358 = vmatprep.subr.bf16.mxu0 0
        %359 = vmatpush1.bf16.msra.mxu0 0
        %360 = vmatprep.subr.bf16.mxu0 0
        %361 = vmatpush1.bf16.msra.mxu0 0
        %362 = vmatprep.mubr.bf16.mxu0 0
        %363 = vmatmul.mubr.bf16.gmra.mrb[0].mxu0 %v328
        %v364 = vpop.f32.mrb[0].mxu0
        %v365 = vadd.f32 0.0, %v364
        %v366 = vpop.f32.mrb[0].mxu0
        %v367 = vadd.f32 0.0, %v366
        %v368 = vpop.f32.mrb[0].mxu0
        %v369 = vadd.f32 0.0, %v368
        %v370 = vpop.f32.mrb[0].mxu0
        %v371 = vadd.f32 0.0, %v370
        %372 = vdwg.mxu0
        %v373 = vadd.f32 %v313, %v365
        %v374 = vadd.f32 %v314, %v367
        %v375 = vadd.f32 %v315, %v369
        %v376 = vadd.f32 %v316, %v371
        %377 = vst [vmem:[#allocation3] sm:$0xff] %v373
        %378 = vst [vmem:[#allocation3 + $0x8] sm:$0xff] %v374
        %379 = vst [vmem:[#allocation3 + $0x10] sm:$0xff] %v375
        %380 = vst [vmem:[#allocation3 + $0x18] sm:$0xff] %v376
        %v381 = vld [vmem:[#allocation3] sm:$0xff]
        %v382 = vld [vmem:[#allocation3 + $0x8] sm:$0xff]
        %v383 = vld [vmem:[#allocation3 + $0x10] sm:$0xff]
        %v384 = vld [vmem:[#allocation3 + $0x18] sm:$0xff]
        %s385 = scalar_lea.vmem [#allocation9], 8
        %v386 = vld [vmem:[%s385] sm:$0xf]
        %v387 = vld [vmem:[%s385 + $0x4] sm:$0xf]
        %v388 = vld [vmem:[#allocation2] sm:$0xff]
        %v389 = vld [vmem:[#allocation2 + $0x8] sm:$0xff]
        %v390 = vld [vmem:[#allocation2 + $0x10] sm:$0xff]
        %v393 = vunpack.c.l.b16 %v386
        %v394 = vunpack.c.l.b16 %v387
        %v395 = vpack.c.b16 %v394, %v393
        %399 = vrot.lane.b32.xlu0 %v388, 127
        %v400 = vpop.permute.xlu0 %399
        %401 = vrot.lane.b32.xlu0 %v389, 127
        %v402 = vpop.permute.xlu0 %401
        %403 = vrot.lane.b32.xlu0 %v390, 127
        %v404 = vpop.permute.xlu0 %403
        %vm405 = vcmask 1039360
        %v406 = vsel %vm405, %v400, %v402
        %v407 = vsel %vm405, %v402, %v404
        %v411 = vsel %vm326, %v395, 0
        %413 = vmatprep.subr.bf16.mxu0 %v407
        %414 = vmatpush1.bf16.msra.mxu0 %v406
        %415 = vmatprep.subr.bf16.mxu0 0
        %416 = vmatpush1.bf16.msra.mxu0 0
        %417 = vmatprep.subr.bf16.mxu0 0
        %418 = vmatpush1.bf16.msra.mxu0 0
        %419 = vmatprep.subr.bf16.mxu0 0
        %420 = vmatpush1.bf16.msra.mxu0 0
        %421 = vmatprep.subr.bf16.mxu0 0
        %422 = vmatpush1.bf16.msra.mxu0 0
        %423 = vmatprep.subr.bf16.mxu0 0
        %424 = vmatpush1.bf16.msra.mxu0 0
        %425 = vmatprep.subr.bf16.mxu0 0
        %426 = vmatpush1.bf16.msra.mxu0 0
        %427 = vmatprep.subr.bf16.mxu0 0
        %428 = vmatpush1.bf16.msra.mxu0 0
        %429 = vmatprep.subr.bf16.mxu0 0
        %430 = vmatpush1.bf16.msra.mxu0 0
        %431 = vmatprep.subr.bf16.mxu0 0
        %432 = vmatpush1.bf16.msra.mxu0 0
        %433 = vmatprep.subr.bf16.mxu0 0
        %434 = vmatpush1.bf16.msra.mxu0 0
        %435 = vmatprep.subr.bf16.mxu0 0
        %436 = vmatpush1.bf16.msra.mxu0 0
        %437 = vmatprep.subr.bf16.mxu0 0
        %438 = vmatpush1.bf16.msra.mxu0 0
        %439 = vmatprep.subr.bf16.mxu0 0
        %440 = vmatpush1.bf16.msra.mxu0 0
        %441 = vmatprep.subr.bf16.mxu0 0
        %442 = vmatpush1.bf16.msra.mxu0 0
        %443 = vmatprep.subr.bf16.mxu0 0
        %444 = vmatpush1.bf16.msra.mxu0 0
        %445 = vmatprep.mubr.bf16.mxu0 0
        %446 = vmatmul.mubr.bf16.gmra.mrb[0].mxu0 %v411
        %v447 = vpop.f32.mrb[0].mxu0
        %v448 = vadd.f32 0.0, %v447
        %v449 = vpop.f32.mrb[0].mxu0
        %v450 = vadd.f32 0.0, %v449
        %v451 = vpop.f32.mrb[0].mxu0
        %v452 = vadd.f32 0.0, %v451
        %v453 = vpop.f32.mrb[0].mxu0
        %v454 = vadd.f32 0.0, %v453
        %455 = vdwg.mxu0
        %v456 = vadd.f32 %v381, %v448
        %v457 = vadd.f32 %v382, %v450
        %v458 = vadd.f32 %v383, %v452
        %v459 = vadd.f32 %v384, %v454
        %460 = vst [vmem:[#allocation3] sm:$0xff] %v456
        %461 = vst [vmem:[#allocation3 + $0x8] sm:$0xff] %v457
        %462 = vst [vmem:[#allocation3 + $0x10] sm:$0xff] %v458
        %463 = vst [vmem:[#allocation3 + $0x18] sm:$0xff] %v459
        %v464 = vld [vmem:[#allocation3] sm:$0xff]
        %v465 = vld [vmem:[#allocation3 + $0x8] sm:$0xff]
        %v466 = vld [vmem:[#allocation3 + $0x10] sm:$0xff]
        %v467 = vld [vmem:[#allocation3 + $0x18] sm:$0xff]
        %s468 = scalar_lea.vmem [#allocation9], 16
        %v469 = vld [vmem:[%s468] sm:$0xf]
        %v470 = vld [vmem:[%s468 + $0x4] sm:$0xf]
        %v471 = vld [vmem:[#allocation2] sm:$0xff]
        %v472 = vld [vmem:[#allocation2 + $0x8] sm:$0xff]
        %v473 = vld [vmem:[#allocation2 + $0x10] sm:$0xff]
        %v476 = vunpack.c.l.b16 %v469
        %v477 = vunpack.c.l.b16 %v470
        %v478 = vpack.c.b16 %v477, %v476
        %482 = vrot.lane.b32.xlu0 %v471, 126
        %v483 = vpop.permute.xlu0 %482
        %484 = vrot.lane.b32.xlu0 %v472, 126
        %v485 = vpop.permute.xlu0 %484
        %486 = vrot.lane.b32.xlu0 %v473, 126
        %v487 = vpop.permute.xlu0 %486
        %vm488 = vcmask 1031168
        %v489 = vsel %vm488, %v483, %v485
        %v490 = vsel %vm488, %v485, %v487
        %v494 = vsel %vm326, %v478, 0
        %496 = vmatprep.subr.bf16.mxu0 %v490
        %497 = vmatpush1.bf16.msra.mxu0 %v489
        %498 = vmatprep.subr.bf16.mxu0 0
        %499 = vmatpush1.bf16.msra.mxu0 0
        %500 = vmatprep.subr.bf16.mxu0 0
        %501 = vmatpush1.bf16.msra.mxu0 0
        %502 = vmatprep.subr.bf16.mxu0 0
        %503 = vmatpush1.bf16.msra.mxu0 0
        %504 = vmatprep.subr.bf16.mxu0 0
        %505 = vmatpush1.bf16.msra.mxu0 0
        %506 = vmatprep.subr.bf16.mxu0 0
        %507 = vmatpush1.bf16.msra.mxu0 0
        %508 = vmatprep.subr.bf16.mxu0 0
        %509 = vmatpush1.bf16.msra.mxu0 0
        %510 = vmatprep.subr.bf16.mxu0 0
        %511 = vmatpush1.bf16.msra.mxu0 0
        %512 = vmatprep.subr.bf16.mxu0 0
        %513 = vmatpush1.bf16.msra.mxu0 0
        %514 = vmatprep.subr.bf16.mxu0 0
        %515 = vmatpush1.bf16.msra.mxu0 0
        %516 = vmatprep.subr.bf16.mxu0 0
        %517 = vmatpush1.bf16.msra.mxu0 0
        %518 = vmatprep.subr.bf16.mxu0 0
        %519 = vmatpush1.bf16.msra.mxu0 0
        %520 = vmatprep.subr.bf16.mxu0 0
        %521 = vmatpush1.bf16.msra.mxu0 0
        %522 = vmatprep.subr.bf16.mxu0 0
        %523 = vmatpush1.bf16.msra.mxu0 0
        %524 = vmatprep.subr.bf16.mxu0 0
        %525 = vmatpush1.bf16.msra.mxu0 0
        %526 = vmatprep.subr.bf16.mxu0 0
        %527 = vmatpush1.bf16.msra.mxu0 0
        %528 = vmatprep.mubr.bf16.mxu0 0
        %529 = vmatmul.mubr.bf16.gmra.mrb[0].mxu0 %v494
        %v530 = vpop.f32.mrb[0].mxu0
        %v531 = vadd.f32 0.0, %v530
        %v532 = vpop.f32.mrb[0].mxu0
        %v533 = vadd.f32 0.0, %v532
        %v534 = vpop.f32.mrb[0].mxu0
        %v535 = vadd.f32 0.0, %v534
        %v536 = vpop.f32.mrb[0].mxu0
        %v537 = vadd.f32 0.0, %v536
        %538 = vdwg.mxu0
        %v539 = vadd.f32 %v464, %v531
        %v540 = vadd.f32 %v465, %v533
        %v541 = vadd.f32 %v466, %v535
        %v542 = vadd.f32 %v467, %v537
        %543 = vst [vmem:[#allocation3] sm:$0xff] %v539
        %544 = vst [vmem:[#allocation3 + $0x8] sm:$0xff] %v540
        %545 = vst [vmem:[#allocation3 + $0x10] sm:$0xff] %v541
        %546 = vst [vmem:[#allocation3 + $0x18] sm:$0xff] %v542
        %v547 = vld [vmem:[#allocation3] sm:$0xff]
        %v548 = vld [vmem:[#allocation3 + $0x8] sm:$0xff]
        %v549 = vld [vmem:[#allocation3 + $0x10] sm:$0xff]
        %v550 = vld [vmem:[#allocation3 + $0x18] sm:$0xff]
        %s551 = scalar_lea.vmem [#allocation9], 24
        %v552 = vld [vmem:[%s551] sm:$0xf]
        %v553 = vld [vmem:[%s551 + $0x4] sm:$0xf]
        %v554 = vld [vmem:[#allocation2] sm:$0xff]
        %v555 = vld [vmem:[#allocation2 + $0x8] sm:$0xff]
        %v556 = vld [vmem:[#allocation2 + $0x10] sm:$0xff]
        %v559 = vunpack.c.l.b16 %v552
        %v560 = vunpack.c.l.b16 %v553
        %v561 = vpack.c.b16 %v560, %v559
        %565 = vrot.lane.b32.xlu0 %v554, 110
        %v566 = vpop.permute.xlu0 %565
        %567 = vrot.lane.b32.xlu0 %v555, 110
        %v568 = vpop.permute.xlu0 %567
        %569 = vrot.lane.b32.xlu0 %v556, 110
        %v570 = vpop.permute.xlu0 %569
        %vm571 = vcmask 900096
        %v572 = vsel %vm571, %v566, %v568
        %v573 = vsel %vm571, %v568, %v570
        %v577 = vsel %vm326, %v561, 0
        %579 = vmatprep.subr.bf16.mxu0 %v573
        %580 = vmatpush1.bf16.msra.mxu0 %v572
        %581 = vmatprep.subr.bf16.mxu0 0
        %582 = vmatpush1.bf16.msra.mxu0 0
        %583 = vmatprep.subr.bf16.mxu0 0
        %584 = vmatpush1.bf16.msra.mxu0 0
        %585 = vmatprep.subr.bf16.mxu0 0
        %586 = vmatpush1.bf16.msra.mxu0 0
        %587 = vmatprep.subr.bf16.mxu0 0
        %588 = vmatpush1.bf16.msra.mxu0 0
        %589 = vmatprep.subr.bf16.mxu0 0
        %590 = vmatpush1.bf16.msra.mxu0 0
        %591 = vmatprep.subr.bf16.mxu0 0
        %592 = vmatpush1.bf16.msra.mxu0 0
        %593 = vmatprep.subr.bf16.mxu0 0
        %594 = vmatpush1.bf16.msra.mxu0 0
        %595 = vmatprep.subr.bf16.mxu0 0
        %596 = vmatpush1.bf16.msra.mxu0 0
        %597 = vmatprep.subr.bf16.mxu0 0
        %598 = vmatpush1.bf16.msra.mxu0 0
        %599 = vmatprep.subr.bf16.mxu0 0
        %600 = vmatpush1.bf16.msra.mxu0 0
        %601 = vmatprep.subr.bf16.mxu0 0
        %602 = vmatpush1.bf16.msra.mxu0 0
        %603 = vmatprep.subr.bf16.mxu0 0
        %604 = vmatpush1.bf16.msra.mxu0 0
        %605 = vmatprep.subr.bf16.mxu0 0
        %606 = vmatpush1.bf16.msra.mxu0 0
        %607 = vmatprep.subr.bf16.mxu0 0
        %608 = vmatpush1.bf16.msra.mxu0 0
        %609 = vmatprep.subr.bf16.mxu0 0
        %610 = vmatpush1.bf16.msra.mxu0 0
        %611 = vmatprep.mubr.bf16.mxu0 0
        %612 = vmatmul.mubr.bf16.gmra.mrb[0].mxu0 %v577
        %v613 = vpop.f32.mrb[0].mxu0
        %v614 = vadd.f32 0.0, %v613
        %v615 = vpop.f32.mrb[0].mxu0
        %v616 = vadd.f32 0.0, %v615
        %v617 = vpop.f32.mrb[0].mxu0
        %v618 = vadd.f32 0.0, %v617
        %v619 = vpop.f32.mrb[0].mxu0
        %v620 = vadd.f32 0.0, %v619
        %621 = vdwg.mxu0
        %v622 = vadd.f32 %v547, %v614
        %v623 = vadd.f32 %v548, %v616
        %v624 = vadd.f32 %v549, %v618
        %v625 = vadd.f32 %v550, %v620
        %626 = vst [vmem:[#allocation3] sm:$0xff] %v622
        %627 = vst [vmem:[#allocation3 + $0x8] sm:$0xff] %v623
        %628 = vst [vmem:[#allocation3 + $0x10] sm:$0xff] %v624
        %629 = vst [vmem:[#allocation3 + $0x18] sm:$0xff] %v625
        %v630 = vld [vmem:[#allocation3] sm:$0xff]
        %v631 = vld [vmem:[#allocation3 + $0x8] sm:$0xff]
        %v632 = vld [vmem:[#allocation3 + $0x10] sm:$0xff]
        %v633 = vld [vmem:[#allocation3 + $0x18] sm:$0xff]
        %s634 = scalar_lea.vmem [#allocation9], 32
        %v635 = vld [vmem:[%s634] sm:$0xf]
        %v636 = vld [vmem:[%s634 + $0x4] sm:$0xf]
        %v637 = vld [vmem:[#allocation2] sm:$0xff]
        %v638 = vld [vmem:[#allocation2 + $0x8] sm:$0xff]
        %v639 = vld [vmem:[#allocation2 + $0x10] sm:$0xff]
        %v642 = vunpack.c.l.b16 %v635
        %v643 = vunpack.c.l.b16 %v636
        %v644 = vpack.c.b16 %v643, %v642
        %648 = vrot.lane.b32.xlu0 %v637, 109
        %v649 = vpop.permute.xlu0 %648
        %650 = vrot.lane.b32.xlu0 %v638, 109
        %v651 = vpop.permute.xlu0 %650
        %652 = vrot.lane.b32.xlu0 %v639, 109
        %v653 = vpop.permute.xlu0 %652
        %vm654 = vcmask 891904
        %v655 = vsel %vm654, %v649, %v651
        %v656 = vsel %vm654, %v651, %v653
        %v660 = vsel %vm326, %v644, 0
        %662 = vmatprep.subr.bf16.mxu0 %v656
        %663 = vmatpush1.bf16.msra.mxu0 %v655
        %664 = vmatprep.subr.bf16.mxu0 0
        %665 = vmatpush1.bf16.msra.mxu0 0
        %666 = vmatprep.subr.bf16.mxu0 0
        %667 = vmatpush1.bf16.msra.mxu0 0
        %668 = vmatprep.subr.bf16.mxu0 0
        %669 = vmatpush1.bf16.msra.mxu0 0
        %670 = vmatprep.subr.bf16.mxu0 0
        %671 = vmatpush1.bf16.msra.mxu0 0
        %672 = vmatprep.subr.bf16.mxu0 0
        %673 = vmatpush1.bf16.msra.mxu0 0
        %674 = vmatprep.subr.bf16.mxu0 0
        %675 = vmatpush1.bf16.msra.mxu0 0
        %676 = vmatprep.subr.bf16.mxu0 0
        %677 = vmatpush1.bf16.msra.mxu0 0
        %678 = vmatprep.subr.bf16.mxu0 0
        %679 = vmatpush1.bf16.msra.mxu0 0
        %680 = vmatprep.subr.bf16.mxu0 0
        %681 = vmatpush1.bf16.msra.mxu0 0
        %682 = vmatprep.subr.bf16.mxu0 0
        %683 = vmatpush1.bf16.msra.mxu0 0
        %684 = vmatprep.subr.bf16.mxu0 0
        %685 = vmatpush1.bf16.msra.mxu0 0
        %686 = vmatprep.subr.bf16.mxu0 0
        %687 = vmatpush1.bf16.msra.mxu0 0
        %688 = vmatprep.subr.bf16.mxu0 0
        %689 = vmatpush1.bf16.msra.mxu0 0
        %690 = vmatprep.subr.bf16.mxu0 0
        %691 = vmatpush1.bf16.msra.mxu0 0
        %692 = vmatprep.subr.bf16.mxu0 0
        %693 = vmatpush1.bf16.msra.mxu0 0
        %694 = vmatprep.mubr.bf16.mxu0 0
        %695 = vmatmul.mubr.bf16.gmra.mrb[0].mxu0 %v660
        %v696 = vpop.f32.mrb[0].mxu0
        %v697 = vadd.f32 0.0, %v696
        %v698 = vpop.f32.mrb[0].mxu0
        %v699 = vadd.f32 0.0, %v698
        %v700 = vpop.f32.mrb[0].mxu0
        %v701 = vadd.f32 0.0, %v700
        %v702 = vpop.f32.mrb[0].mxu0
        %v703 = vadd.f32 0.0, %v702
        %704 = vdwg.mxu0
        %v705 = vadd.f32 %v630, %v697
        %v706 = vadd.f32 %v631, %v699
        %v707 = vadd.f32 %v632, %v701
        %v708 = vadd.f32 %v633, %v703
        %709 = vst [vmem:[#allocation3] sm:$0xff] %v705
        %710 = vst [vmem:[#allocation3 + $0x8] sm:$0xff] %v706
        %711 = vst [vmem:[#allocation3 + $0x10] sm:$0xff] %v707
        %712 = vst [vmem:[#allocation3 + $0x18] sm:$0xff] %v708
        %v713 = vld [vmem:[#allocation3] sm:$0xff]
        %v714 = vld [vmem:[#allocation3 + $0x8] sm:$0xff]
        %v715 = vld [vmem:[#allocation3 + $0x10] sm:$0xff]
        %v716 = vld [vmem:[#allocation3 + $0x18] sm:$0xff]
        %s717 = scalar_lea.vmem [#allocation9], 40
        %v718 = vld [vmem:[%s717] sm:$0xf]
        %v719 = vld [vmem:[%s717 + $0x4] sm:$0xf]
        %v720 = vld [vmem:[#allocation2] sm:$0xff]
        %v721 = vld [vmem:[#allocation2 + $0x8] sm:$0xff]
        %v722 = vld [vmem:[#allocation2 + $0x10] sm:$0xff]
        %v725 = vunpack.c.l.b16 %v718
        %v726 = vunpack.c.l.b16 %v719
        %v727 = vpack.c.b16 %v726, %v725
        %731 = vrot.lane.b32.xlu0 %v720, 108
        %v732 = vpop.permute.xlu0 %731
        %733 = vrot.lane.b32.xlu0 %v721, 108
        %v734 = vpop.permute.xlu0 %733
        %735 = vrot.lane.b32.xlu0 %v722, 108
        %v736 = vpop.permute.xlu0 %735
        %vm737 = vcmask 883712
        %v738 = vsel %vm737, %v732, %v734
        %v739 = vsel %vm737, %v734, %v736
        %v743 = vsel %vm326, %v727, 0
        %745 = vmatprep.subr.bf16.mxu0 %v739
        %746 = vmatpush1.bf16.msra.mxu0 %v738
        %747 = vmatprep.subr.bf16.mxu0 0
        %748 = vmatpush1.bf16.msra.mxu0 0
        %749 = vmatprep.subr.bf16.mxu0 0
        %750 = vmatpush1.bf16.msra.mxu0 0
        %751 = vmatprep.subr.bf16.mxu0 0
        %752 = vmatpush1.bf16.msra.mxu0 0
        %753 = vmatprep.subr.bf16.mxu0 0
        %754 = vmatpush1.bf16.msra.mxu0 0
        %755 = vmatprep.subr.bf16.mxu0 0
        %756 = vmatpush1.bf16.msra.mxu0 0
        %757 = vmatprep.subr.bf16.mxu0 0
        %758 = vmatpush1.bf16.msra.mxu0 0
        %759 = vmatprep.subr.bf16.mxu0 0
        %760 = vmatpush1.bf16.msra.mxu0 0
        %761 = vmatprep.subr.bf16.mxu0 0
        %762 = vmatpush1.bf16.msra.mxu0 0
        %763 = vmatprep.subr.bf16.mxu0 0
        %764 = vmatpush1.bf16.msra.mxu0 0
        %765 = vmatprep.subr.bf16.mxu0 0
        %766 = vmatpush1.bf16.msra.mxu0 0
        %767 = vmatprep.subr.bf16.mxu0 0
        %768 = vmatpush1.bf16.msra.mxu0 0
        %769 = vmatprep.subr.bf16.mxu0 0
        %770 = vmatpush1.bf16.msra.mxu0 0
        %771 = vmatprep.subr.bf16.mxu0 0
        %772 = vmatpush1.bf16.msra.mxu0 0
        %773 = vmatprep.subr.bf16.mxu0 0
        %774 = vmatpush1.bf16.msra.mxu0 0
        %775 = vmatprep.subr.bf16.mxu0 0
        %776 = vmatpush1.bf16.msra.mxu0 0
        %777 = vmatprep.mubr.bf16.mxu0 0
        %778 = vmatmul.mubr.bf16.gmra.mrb[0].mxu0 %v743
        %v779 = vpop.f32.mrb[0].mxu0
        %v780 = vadd.f32 0.0, %v779
        %v781 = vpop.f32.mrb[0].mxu0
        %v782 = vadd.f32 0.0, %v781
        %v783 = vpop.f32.mrb[0].mxu0
        %v784 = vadd.f32 0.0, %v783
        %v785 = vpop.f32.mrb[0].mxu0
        %v786 = vadd.f32 0.0, %v785
        %787 = vdwg.mxu0
        %v788 = vadd.f32 %v713, %v780
        %v789 = vadd.f32 %v714, %v782
        %v790 = vadd.f32 %v715, %v784
        %v791 = vadd.f32 %v716, %v786
        %792 = vst [vmem:[#allocation3] sm:$0xff] %v788
        %793 = vst [vmem:[#allocation3 + $0x8] sm:$0xff] %v789
        %794 = vst [vmem:[#allocation3 + $0x10] sm:$0xff] %v790
        %795 = vst [vmem:[#allocation3 + $0x18] sm:$0xff] %v791
        %v796 = vld [vmem:[#allocation3] sm:$0xff]
        %v797 = vld [vmem:[#allocation3 + $0x8] sm:$0xff]
        %v798 = vld [vmem:[#allocation3 + $0x10] sm:$0xff]
        %v799 = vld [vmem:[#allocation3 + $0x18] sm:$0xff]
        %s800 = scalar_lea.vmem [#allocation9], 48
        %v801 = vld [vmem:[%s800] sm:$0xf]
        %v802 = vld [vmem:[%s800 + $0x4] sm:$0xf]
        %v803 = vld [vmem:[#allocation2] sm:$0xff]
        %v804 = vld [vmem:[#allocation2 + $0x8] sm:$0xff]
        %v805 = vld [vmem:[#allocation2 + $0x10] sm:$0xff]
        %v808 = vunpack.c.l.b16 %v801
        %v809 = vunpack.c.l.b16 %v802
        %v810 = vpack.c.b16 %v809, %v808
        %814 = vrot.lane.b32.xlu0 %v803, 92
        %v815 = vpop.permute.xlu0 %814
        %816 = vrot.lane.b32.xlu0 %v804, 92
        %v817 = vpop.permute.xlu0 %816
        %818 = vrot.lane.b32.xlu0 %v805, 92
        %v819 = vpop.permute.xlu0 %818
        %vm820 = vcmask 752640
        %v821 = vsel %vm820, %v815, %v817
        %v822 = vsel %vm820, %v817, %v819
        %v826 = vsel %vm326, %v810, 0
        %828 = vmatprep.subr.bf16.mxu0 %v822
        %829 = vmatpush1.bf16.msra.mxu0 %v821
        %830 = vmatprep.subr.bf16.mxu0 0
        %831 = vmatpush1.bf16.msra.mxu0 0
        %832 = vmatprep.subr.bf16.mxu0 0
        %833 = vmatpush1.bf16.msra.mxu0 0
        %834 = vmatprep.subr.bf16.mxu0 0
        %835 = vmatpush1.bf16.msra.mxu0 0
        %836 = vmatprep.subr.bf16.mxu0 0
        %837 = vmatpush1.bf16.msra.mxu0 0
        %838 = vmatprep.subr.bf16.mxu0 0
        %839 = vmatpush1.bf16.msra.mxu0 0
        %840 = vmatprep.subr.bf16.mxu0 0
        %841 = vmatpush1.bf16.msra.mxu0 0
        %842 = vmatprep.subr.bf16.mxu0 0
        %843 = vmatpush1.bf16.msra.mxu0 0
        %844 = vmatprep.subr.bf16.mxu0 0
        %845 = vmatpush1.bf16.msra.mxu0 0
        %846 = vmatprep.subr.bf16.mxu0 0
        %847 = vmatpush1.bf16.msra.mxu0 0
        %848 = vmatprep.subr.bf16.mxu0 0
        %849 = vmatpush1.bf16.msra.mxu0 0
        %850 = vmatprep.subr.bf16.mxu0 0
        %851 = vmatpush1.bf16.msra.mxu0 0
        %852 = vmatprep.subr.bf16.mxu0 0
        %853 = vmatpush1.bf16.msra.mxu0 0
        %854 = vmatprep.subr.bf16.mxu0 0
        %855 = vmatpush1.bf16.msra.mxu0 0
        %856 = vmatprep.subr.bf16.mxu0 0
        %857 = vmatpush1.bf16.msra.mxu0 0
        %858 = vmatprep.subr.bf16.mxu0 0
        %859 = vmatpush1.bf16.msra.mxu0 0
        %860 = vmatprep.mubr.bf16.mxu0 0
        %861 = vmatmul.mubr.bf16.gmra.mrb[0].mxu0 %v826
        %v862 = vpop.f32.mrb[0].mxu0
        %v863 = vadd.f32 0.0, %v862
        %v864 = vpop.f32.mrb[0].mxu0
        %v865 = vadd.f32 0.0, %v864
        %v866 = vpop.f32.mrb[0].mxu0
        %v867 = vadd.f32 0.0, %v866
        %v868 = vpop.f32.mrb[0].mxu0
        %v869 = vadd.f32 0.0, %v868
        %870 = vdwg.mxu0
        %v871 = vadd.f32 %v796, %v863
        %v872 = vadd.f32 %v797, %v865
        %v873 = vadd.f32 %v798, %v867
        %v874 = vadd.f32 %v799, %v869
        %875 = vst [vmem:[#allocation3] sm:$0xff] %v871
        %876 = vst [vmem:[#allocation3 + $0x8] sm:$0xff] %v872
        %877 = vst [vmem:[#allocation3 + $0x10] sm:$0xff] %v873
        %878 = vst [vmem:[#allocation3 + $0x18] sm:$0xff] %v874
        %v879 = vld [vmem:[#allocation3] sm:$0xff]
        %v880 = vld [vmem:[#allocation3 + $0x8] sm:$0xff]
        %v881 = vld [vmem:[#allocation3 + $0x10] sm:$0xff]
        %v882 = vld [vmem:[#allocation3 + $0x18] sm:$0xff]
        %s883 = scalar_lea.vmem [#allocation9], 56
        %v884 = vld [vmem:[%s883] sm:$0xf]
        %v885 = vld [vmem:[%s883 + $0x4] sm:$0xf]
        %v886 = vld [vmem:[#allocation2] sm:$0xff]
        %v887 = vld [vmem:[#allocation2 + $0x8] sm:$0xff]
        %v888 = vld [vmem:[#allocation2 + $0x10] sm:$0xff]
        %v891 = vunpack.c.l.b16 %v884
        %v892 = vunpack.c.l.b16 %v885
        %v893 = vpack.c.b16 %v892, %v891
        %897 = vrot.lane.b32.xlu0 %v886, 91
        %v898 = vpop.permute.xlu0 %897
        %899 = vrot.lane.b32.xlu0 %v887, 91
        %v900 = vpop.permute.xlu0 %899
        %901 = vrot.lane.b32.xlu0 %v888, 91
        %v902 = vpop.permute.xlu0 %901
        %vm903 = vcmask 744448
        %v904 = vsel %vm903, %v898, %v900
        %v905 = vsel %vm903, %v900, %v902
        %v909 = vsel %vm326, %v893, 0
        %911 = vmatprep.subr.bf16.mxu0 %v905
        %912 = vmatpush1.bf16.msra.mxu0 %v904
        %913 = vmatprep.subr.bf16.mxu0 0
        %914 = vmatpush1.bf16.msra.mxu0 0
        %915 = vmatprep.subr.bf16.mxu0 0
        %916 = vmatpush1.bf16.msra.mxu0 0
        %917 = vmatprep.subr.bf16.mxu0 0
        %918 = vmatpush1.bf16.msra.mxu0 0
        %919 = vmatprep.subr.bf16.mxu0 0
        %920 = vmatpush1.bf16.msra.mxu0 0
        %921 = vmatprep.subr.bf16.mxu0 0
        %922 = vmatpush1.bf16.msra.mxu0 0
        %923 = vmatprep.subr.bf16.mxu0 0
        %924 = vmatpush1.bf16.msra.mxu0 0
        %925 = vmatprep.subr.bf16.mxu0 0
        %926 = vmatpush1.bf16.msra.mxu0 0
        %927 = vmatprep.subr.bf16.mxu0 0
        %928 = vmatpush1.bf16.msra.mxu0 0
        %929 = vmatprep.subr.bf16.mxu0 0
        %930 = vmatpush1.bf16.msra.mxu0 0
        %931 = vmatprep.subr.bf16.mxu0 0
        %932 = vmatpush1.bf16.msra.mxu0 0
        %933 = vmatprep.subr.bf16.mxu0 0
        %934 = vmatpush1.bf16.msra.mxu0 0
        %935 = vmatprep.subr.bf16.mxu0 0
        %936 = vmatpush1.bf16.msra.mxu0 0
        %937 = vmatprep.subr.bf16.mxu0 0
        %938 = vmatpush1.bf16.msra.mxu0 0
        %939 = vmatprep.subr.bf16.mxu0 0
        %940 = vmatpush1.bf16.msra.mxu0 0
        %941 = vmatprep.subr.bf16.mxu0 0
        %942 = vmatpush1.bf16.msra.mxu0 0
        %943 = vmatprep.mubr.bf16.mxu0 0
        %944 = vmatmul.mubr.bf16.gmra.mrb[0].mxu0 %v909
        %v945 = vpop.f32.mrb[0].mxu0
        %v946 = vadd.f32 0.0, %v945
        %v947 = vpop.f32.mrb[0].mxu0
        %v948 = vadd.f32 0.0, %v947
        %v949 = vpop.f32.mrb[0].mxu0
        %v950 = vadd.f32 0.0, %v949
        %v951 = vpop.f32.mrb[0].mxu0
        %v952 = vadd.f32 0.0, %v951
        %953 = vdwg.mxu0
        %v954 = vadd.f32 %v879, %v946
        %v955 = vadd.f32 %v880, %v948
        %v956 = vadd.f32 %v881, %v950
        %v957 = vadd.f32 %v882, %v952
        %958 = vst [vmem:[#allocation3] sm:$0xff] %v954
        %959 = vst [vmem:[#allocation3 + $0x8] sm:$0xff] %v955
        %960 = vst [vmem:[#allocation3 + $0x10] sm:$0xff] %v956
        %961 = vst [vmem:[#allocation3 + $0x18] sm:$0xff] %v957
        %v962 = vld [vmem:[#allocation3] sm:$0xff]
        %v963 = vld [vmem:[#allocation3 + $0x8] sm:$0xff]
        %v964 = vld [vmem:[#allocation3 + $0x10] sm:$0xff]
        %v965 = vld [vmem:[#allocation3 + $0x18] sm:$0xff]
        %s966 = scalar_lea.vmem [#allocation9], 64
        %v967 = vld [vmem:[%s966] sm:$0xf]
        %v968 = vld [vmem:[%s966 + $0x4] sm:$0xf]
        %v969 = vld [vmem:[#allocation2] sm:$0xff]
        %v970 = vld [vmem:[#allocation2 + $0x8] sm:$0xff]
        %v971 = vld [vmem:[#allocation2 + $0x10] sm:$0xff]
        %v974 = vunpack.c.l.b16 %v967
        %v975 = vunpack.c.l.b16 %v968
        %v976 = vpack.c.b16 %v975, %v974
        %980 = vrot.lane.b32.xlu0 %v969, 90
        %v981 = vpop.permute.xlu0 %980
        %982 = vrot.lane.b32.xlu0 %v970, 90
        %v983 = vpop.permute.xlu0 %982
        %984 = vrot.lane.b32.xlu0 %v971, 90
        %v985 = vpop.permute.xlu0 %984
        %vm986 = vcmask 736256
        %v987 = vsel %vm986, %v981, %v983
        %v988 = vsel %vm986, %v983, %v985
        %v992 = vsel %vm326, %v976, 0
        %994 = vmatprep.subr.bf16.mxu0 %v988
        %995 = vmatpush1.bf16.msra.mxu0 %v987
        %996 = vmatprep.subr.bf16.mxu0 0
        %997 = vmatpush1.bf16.msra.mxu0 0
        %998 = vmatprep.subr.bf16.mxu0 0
        %999 = vmatpush1.bf16.msra.mxu0 0
        %1000 = vmatprep.subr.bf16.mxu0 0
        %1001 = vmatpush1.bf16.msra.mxu0 0
        %1002 = vmatprep.subr.bf16.mxu0 0
        %1003 = vmatpush1.bf16.msra.mxu0 0
        %1004 = vmatprep.subr.bf16.mxu0 0
        %1005 = vmatpush1.bf16.msra.mxu0 0
        %1006 = vmatprep.subr.bf16.mxu0 0
        %1007 = vmatpush1.bf16.msra.mxu0 0
        %1008 = vmatprep.subr.bf16.mxu0 0
        %1009 = vmatpush1.bf16.msra.mxu0 0
        %1010 = vmatprep.subr.bf16.mxu0 0
        %1011 = vmatpush1.bf16.msra.mxu0 0
        %1012 = vmatprep.subr.bf16.mxu0 0
        %1013 = vmatpush1.bf16.msra.mxu0 0
        %1014 = vmatprep.subr.bf16.mxu0 0
        %1015 = vmatpush1.bf16.msra.mxu0 0
        %1016 = vmatprep.subr.bf16.mxu0 0
        %1017 = vmatpush1.bf16.msra.mxu0 0
        %1018 = vmatprep.subr.bf16.mxu0 0
        %1019 = vmatpush1.bf16.msra.mxu0 0
        %1020 = vmatprep.subr.bf16.mxu0 0
        %1021 = vmatpush1.bf16.msra.mxu0 0
        %1022 = vmatprep.subr.bf16.mxu0 0
        %1023 = vmatpush1.bf16.msra.mxu0 0
        %1024 = vmatprep.subr.bf16.mxu0 0
        %1025 = vmatpush1.bf16.msra.mxu0 0
        %1026 = vmatprep.mubr.bf16.mxu0 0
        %1027 = vmatmul.mubr.bf16.gmra.mrb[0].mxu0 %v992
        %v1028 = vpop.f32.mrb[0].mxu0
        %v1029 = vadd.f32 0.0, %v1028
        %v1030 = vpop.f32.mrb[0].mxu0
        %v1031 = vadd.f32 0.0, %v1030
        %v1032 = vpop.f32.mrb[0].mxu0
        %v1033 = vadd.f32 0.0, %v1032
        %v1034 = vpop.f32.mrb[0].mxu0
        %v1035 = vadd.f32 0.0, %v1034
        %1036 = vdwg.mxu0
        %v1037 = vadd.f32 %v962, %v1029
        %v1038 = vadd.f32 %v963, %v1031
        %v1039 = vadd.f32 %v964, %v1033
        %v1040 = vadd.f32 %v965, %v1035
        %1041 = vst [vmem:[#allocation3] sm:$0xff] %v1037
        %1042 = vst [vmem:[#allocation3 + $0x8] sm:$0xff] %v1038
        %1043 = vst [vmem:[#allocation3 + $0x10] sm:$0xff] %v1039
        %1044 = vst [vmem:[#allocation3 + $0x18] sm:$0xff] %v1040
        %v1045 = vld [vmem:[#allocation3] sm:$0xff]
        %v1046 = vld [vmem:[#allocation3 + $0x8] sm:$0xff]
        %v1047 = vld [vmem:[#allocation3 + $0x10] sm:$0xff]
        %v1048 = vld [vmem:[#allocation3 + $0x18] sm:$0xff]
        %1049 = vst [vmem:[%s276] sm:$0xff] %v1045
        %1050 = vst [vmem:[%s276 + $0x8] sm:$0xff] %v1046
        %1051 = vst [vmem:[%s276 + $0x10] sm:$0xff] %v1047
        %1052 = vst [vmem:[%s276 + $0x18] sm:$0xff] %v1048
        %s1053 = sand.u32 %s126, 1
        %s1054 = scalar_lea.sflag [#allocation6], %s1053
        %s1055 = sand.u32 %s126, 1
        %s1056 = smul.addr %s1055, 32
        %s1057 = scalar_lea.vmem [#allocation10], %s1056
        // Predicated region
        $region45: #{tpu_custom_call.1} parent=31 // pred_check
          %p1058 = pneg %p136
        $region46: #{tpu_custom_call.1} parent=31 // pred_check_branch
          %1060 = sbr.rel (%p1058) target = $region48
        $region47: #{tpu_custom_call.1} parent=31 // pred_region
          %s1061 = smul.u32 2, %s28
          %s1063 = ssub.s32 512, 512
          %1064 = vsyncadd %s1054, %s1063
          %s1065 = smul.addr %s27, 8
          %s1066 = sadd.s32 %s1061, %s1065
          %s1067 = smul.addr %s1066, 128
          %s1068 = scalar_lea.hbm %s3, %s1067
          %s1069 = sshll.u32 %s1057, 4
          %s1070 = int_to_ptr.vmem [resolvable:$true] %s1069
          %1075 = dma.vmem_to_hbm [thread:$0]  %s1070, 512, %s1068, %s1054, 256, 512, 16
        $region48: #{tpu_custom_call.1} parent=31 // pred_fallthru
          _
      $region32: #{tpu_custom_call.1} parent=5 // pred_fallthru
        _
      %p1076 = scmp.le.s32.totalorder 2, %s18
      // Predicated region
      $region49: #{tpu_custom_call.1} parent=5 // pred_check
        %p1077 = pneg %p1076
      $region50: #{tpu_custom_call.1} parent=5 // pred_check_branch
        %1079 = sbr.rel (%p1077) target = $region52
      $region51: #{tpu_custom_call.1} parent=5 // pred_region
        %s1080 = ssub.s32 %s18, 2
        // Predicated region
        $region53: #{tpu_custom_call.1} parent=51 // pred_check
          %p1081 = pneg %p142
        $region54: #{tpu_custom_call.1} parent=51 // pred_check_branch
          %1083 = sbr.rel (%p1081) target = $region56
        $region55: #{tpu_custom_call.1} parent=51 // pred_region
          %s1084 = sand.u32 %s127, 1
          %s1085 = scalar_lea.sflag [#allocation6], %s1084
          %s1086 = sand.u32 %s127, 1
          %s1087 = smul.addr %s1086, 32
          %s1088 = scalar_lea.vmem [#allocation10], %s1087
          %1089 = dma.done %s1085, 512
        $region56: #{tpu_custom_call.1} parent=51 // pred_fallthru
          _
      $region52: #{tpu_custom_call.1} parent=5 // pred_fallthru
        _
    $region6: #{tpu_custom_call.1} parent=1 // loop_footer
      %s22 = sadd.s32 1, %s18
    $region7: #{tpu_custom_call.1} parent=1 // loop_footer_branch
      %17 = sbr.rel target = $region3
    $region8: #{tpu_custom_call.1} parent=1 // loop_exit
      _
    %1090 = vsyncpa [#allocation5], 1
    %s1091 = scalar_lea.sflag [#allocation5], 1
    %1092 = vsyncpa %s1091, 1
    %1093 = vsyncpa [#allocation8], 1
    %s1094 = scalar_lea.sflag [#allocation8], 1
    %1095 = vsyncpa %s1094, 1
    %1096 = vsyncpa [#allocation6], 1
    %s1097 = scalar_lea.sflag [#allocation6], 1
    %1098 = vsyncpa %s1097, 1

</llo_original>
